<compile_context>
chip_gen: v7x
topology: tpu7x:2x2x1
jax: 0.10.0
libtpu: 0.0.40
codegen_flags: <defaults>
</compile_context>

<pallas_src>
import jax
import jax.numpy as jnp
from jax.experimental import pallas as pl
from jax.experimental.pallas import tpu as pltpu


# ---------------------------------------------------------------------------
# Single fused kernel: fc1+BN1+ReLU -> fc2+BN2+ReLU -> fc3+sigmoid
# ---------------------------------------------------------------------------
def _fc_disc_kernel(x_ref,
                    w1_ref, b1_ref, g1_ref, be1_ref,
                    w2_ref, b2_ref, g2_ref, be2_ref,
                    w3_ref, b3_ref,
                    o_ref):
    eps = 1e-5

    # ---- fc1 (32 -> 128) + BatchNorm1d(128, train stats) + ReLU ----
    h1 = jnp.dot(x_ref[...], w1_ref[...],
                 preferred_element_type=jnp.float32) + b1_ref[...]
    m1 = jnp.mean(h1, axis=0, keepdims=True)
    v1 = jnp.mean(jnp.square(h1 - m1), axis=0, keepdims=True)   # biased var
    h1 = (h1 - m1) * jax.lax.rsqrt(v1 + eps) * g1_ref[...] + be1_ref[...]
    h1 = jnp.maximum(h1, 0.0)

    # ---- fc2 (128 -> 64) + BatchNorm1d(64, train stats) + ReLU ----
    h2 = jnp.dot(h1, w2_ref[...],
                 preferred_element_type=jnp.float32) + b2_ref[...]
    m2 = jnp.mean(h2, axis=0, keepdims=True)
    v2 = jnp.mean(jnp.square(h2 - m2), axis=0, keepdims=True)
    h2 = (h2 - m2) * jax.lax.rsqrt(v2 + eps) * g2_ref[...] + be2_ref[...]
    h2 = jnp.maximum(h2, 0.0)

    # ---- fc3 (64 -> 1): VPU multiply + lane reduction (no width-1 matmul) ---
    y = jnp.sum(h2 * w3_ref[...], axis=-1, keepdims=True) + b3_ref[...]

    # ---- numerically stable sigmoid ----
    z = jnp.exp(-jnp.abs(y))
    o_ref[...] = jnp.where(y >= 0.0, 1.0 / (1.0 + z), z / (1.0 + z))


# ---------------------------------------------------------------------------
# pallas_call plumbing (single full-array block; everything fits VMEM easily)
# ---------------------------------------------------------------------------
def _full_spec(shape):
    nd = len(shape)
    return pl.BlockSpec(shape, lambda i, nd=nd: (0,) * nd)


def fc_spatial_discriminator_forward(x, params):
    """x: [N, 32] float32 -> [N, 1] float32 (matches module forward)."""
    N = x.shape[0]

    # PyTorch Linear weights are [out, in]; pre-transpose to [in, out].
    w1 = jnp.transpose(params["fc1_w"], (1, 0))            # [32, 128]
    w2 = jnp.transpose(params["fc2_w"], (1, 0))            # [128, 64]
    w3 = params["fc3_w"].reshape(1, 64)                    # row vector for VPU path

    inputs = [
        x,
        w1, params["fc1_b"].reshape(1, 128),
        params["bn1_gamma"].reshape(1, 128), params["bn1_beta"].reshape(1, 128),
        w2, params["fc2_b"].reshape(1, 64),
        params["bn2_gamma"].reshape(1, 64), params["bn2_beta"].reshape(1, 64),
        w3, params["fc3_b"].reshape(1, 1),
    ]

    flops = 2 * N * (32 * 128 + 128 * 64 + 64) + 12 * N * (128 + 64)
    bytes_accessed = 4 * (sum(int(a.size) for a in inputs) + N)
    cost = pl.CostEstimate(flops=flops,
                           transcendentals=N + 2 * (128 + 64),
                           bytes_accessed=bytes_accessed)

    out = pl.pallas_call(
        _fc_disc_kernel,
        grid=(1,),
        in_specs=[_full_spec(a.shape) for a in inputs],
        out_specs=_full_spec((N, 1)),
        out_shape=jax.ShapeDtypeStruct((N, 1), jnp.float32),
        compiler_params=pltpu.CompilerParams(
            dimension_semantics=("arbitrary",),
            vmem_limit_bytes=32 * 1024 * 1024,
        ),
        cost_estimate=cost,
    )(*inputs)
    return out


# ---------------------------------------------------------------------------
# Pure-JAX reference (for correctness check only)
# ---------------------------------------------------------------------------
def _reference_forward(x, params):
    eps = 1e-5

    def bn(h, g, b):
        m = jnp.mean(h, axis=0, keepdims=True)
        v = jnp.mean(jnp.square(h - m), axis=0, keepdims=True)
        return (h - m) / jnp.sqrt(v + eps) * g + b

    h1 = x @ params["fc1_w"].T + params["fc1_b"]
    h1 = jnp.maximum(bn(h1, params["bn1_gamma"], params["bn1_beta"]), 0.0)
    h2 = h1 @ params["fc2_w"].T + params["fc2_b"]
    h2 = jnp.maximum(bn(h2, params["bn2_gamma"], params["bn2_beta"]), 0.0)
    y = h2 @ params["fc3_w"].T + params["fc3_b"]
    return jax.nn.sigmoid(y)


# ---------------------------------------------------------------------------
# Deterministic parameter init (shapes match the PyTorch module)
# ---------------------------------------------------------------------------
def init_params(key):
    ks = jax.random.split(key, 10)
    return dict(
        fc1_w=0.1 * jax.random.normal(ks[0], (128, 32), jnp.float32),
        fc1_b=0.05 * jax.random.normal(ks[1], (128,), jnp.float32),
        bn1_gamma=1.0 + 0.1 * jax.random.normal(ks[2], (128,), jnp.float32),
        bn1_beta=0.1 * jax.random.normal(ks[3], (128,), jnp.float32),
        fc2_w=0.1 * jax.random.normal(ks[4], (64, 128), jnp.float32),
        fc2_b=0.05 * jax.random.normal(ks[5], (64,), jnp.float32),
        bn2_gamma=1.0 + 0.1 * jax.random.normal(ks[6], (64,), jnp.float32),
        bn2_beta=0.1 * jax.random.normal(ks[7], (64,), jnp.float32),
        fc3_w=0.05 * jax.random.normal(ks[8], (1, 64), jnp.float32),
        fc3_b=0.01 * jax.random.normal(ks[9], (1,), jnp.float32),
    )


if __name__ == "__main__":
    key = jax.random.PRNGKey(0)
    kx, kp = jax.random.split(key)

    N = 8  # BatchNorm1d training stats need N > 1; 8 also fills the sublanes.
    x = jax.random.normal(kx, (N, 32), jnp.float32)
    params = init_params(kp)

    out = jax.jit(fc_spatial_discriminator_forward)(x, params)
    out = jax.block_until_ready(out)

    ref = _reference_forward(x, params)

    assert out.shape == (N, 1)
    assert bool(jnp.all(jnp.isfinite(out)))
    assert bool(jnp.allclose(out, ref, atol=1e-5, rtol=1e-5))
    print("KERNEL_OK")
</pallas_src>

<mosaic_0001>
module attributes {stable_mosaic.version = 11 : i64} {
  func.func @_fc_disc_kernel(%arg0: i32, %arg1: memref<8x32xf32, #tpu.memory_space<vmem>>, %arg2: memref<32x128xf32, #tpu.memory_space<vmem>>, %arg3: memref<1x128xf32, #tpu.memory_space<vmem>>, %arg4: memref<1x128xf32, #tpu.memory_space<vmem>>, %arg5: memref<1x128xf32, #tpu.memory_space<vmem>>, %arg6: memref<128x64xf32, #tpu.memory_space<vmem>>, %arg7: memref<1x64xf32, #tpu.memory_space<vmem>>, %arg8: memref<1x64xf32, #tpu.memory_space<vmem>>, %arg9: memref<1x64xf32, #tpu.memory_space<vmem>>, %arg10: memref<1x64xf32, #tpu.memory_space<vmem>>, %arg11: memref<1x1xf32, #tpu.memory_space<vmem>>, %arg12: memref<8x1xf32, #tpu.memory_space<vmem>>) attributes {dimension_semantics = [#tpu.dimension_semantics<arbitrary>], iteration_bounds = array<i64: 1>, scalar_prefetch = 0 : i64, scratch_operands = 0 : i64, tpu.core_type = #tpu.core_type<tc>, window_params = [{pipeline_mode = #tpu.pipeline_mode<synchronous>, transform_indices = @transform_0, window_bounds = array<i64: 8, 32>}, {pipeline_mode = #tpu.pipeline_mode<synchronous>, transform_indices = @transform_1, window_bounds = array<i64: 32, 128>}, {pipeline_mode = #tpu.pipeline_mode<synchronous>, transform_indices = @transform_2, window_bounds = array<i64: 1, 128>}, {pipeline_mode = #tpu.pipeline_mode<synchronous>, transform_indices = @transform_3, window_bounds = array<i64: 1, 128>}, {pipeline_mode = #tpu.pipeline_mode<synchronous>, transform_indices = @transform_4, window_bounds = array<i64: 1, 128>}, {pipeline_mode = #tpu.pipeline_mode<synchronous>, transform_indices = @transform_5, window_bounds = array<i64: 128, 64>}, {pipeline_mode = #tpu.pipeline_mode<synchronous>, transform_indices = @transform_6, window_bounds = array<i64: 1, 64>}, {pipeline_mode = #tpu.pipeline_mode<synchronous>, transform_indices = @transform_7, window_bounds = array<i64: 1, 64>}, {pipeline_mode = #tpu.pipeline_mode<synchronous>, transform_indices = @transform_8, window_bounds = array<i64: 1, 64>}, {pipeline_mode = #tpu.pipeline_mode<synchronous>, transform_indices = @transform_9, window_bounds = array<i64: 1, 64>}, {pipeline_mode = #tpu.pipeline_mode<synchronous>, transform_indices = @transform_10, window_bounds = array<i64: 1, 1>}, {pipeline_mode = #tpu.pipeline_mode<synchronous>, transform_indices = @transform_11, window_bounds = array<i64: 8, 1>}]} {
    %c0 = arith.constant 0 : index
    %c0_0 = arith.constant 0 : index
    %0 = vector.load %arg1[%c0, %c0_0] : memref<8x32xf32, #tpu.memory_space<vmem>>, vector<8x32xf32>
    %c0_1 = arith.constant 0 : index
    %c0_2 = arith.constant 0 : index
    %1 = vector.load %arg2[%c0_1, %c0_2] : memref<32x128xf32, #tpu.memory_space<vmem>>, vector<32x128xf32>
    %cst = arith.constant dense<0.000000e+00> : vector<8x128xf32>
    %2 = tpu.matmul %0, %1, %cst {dimension_numbers = #tpu.dot_dimension_numbers<[1], [0], [0], [1], [0, 0, 1, 1], [], []>} : vector<8x32xf32>, vector<32x128xf32>, vector<8x128xf32> -> vector<8x128xf32>
    %c0_3 = arith.constant 0 : index
    %c0_4 = arith.constant 0 : index
    %3 = vector.load %arg3[%c0_3, %c0_4] : memref<1x128xf32, #tpu.memory_space<vmem>>, vector<1x128xf32>
    %4 = vector.broadcast %3 : vector<1x128xf32> to vector<8x128xf32>
    %5 = arith.addf %2, %4 : vector<8x128xf32>
    %cst_5 = arith.constant dense<0.000000e+00> : vector<128xf32>
    %6 = vector.multi_reduction <add>, %5, %cst_5 [0] : vector<8x128xf32> to vector<128xf32>
    %7 = vector.shape_cast %6 : vector<128xf32> to vector<1x128xf32>
    %cst_6 = arith.constant 8.000000e+00 : f32
    %8 = vector.broadcast %cst_6 : f32 to vector<1x128xf32>
    %9 = arith.divf %7, %8 : vector<1x128xf32>
    %10 = vector.broadcast %9 : vector<1x128xf32> to vector<8x128xf32>
    %11 = arith.subf %5, %10 : vector<8x128xf32>
    %12 = arith.mulf %11, %11 : vector<8x128xf32>
    %cst_7 = arith.constant dense<0.000000e+00> : vector<128xf32>
    %13 = vector.multi_reduction <add>, %12, %cst_7 [0] : vector<8x128xf32> to vector<128xf32>
    %14 = vector.shape_cast %13 : vector<128xf32> to vector<1x128xf32>
    %cst_8 = arith.constant 8.000000e+00 : f32
    %15 = vector.broadcast %cst_8 : f32 to vector<1x128xf32>
    %16 = arith.divf %14, %15 : vector<1x128xf32>
    %17 = vector.broadcast %9 : vector<1x128xf32> to vector<8x128xf32>
    %18 = arith.subf %5, %17 : vector<8x128xf32>
    %cst_9 = arith.constant 9.99999974E-6 : f32
    %19 = vector.broadcast %cst_9 : f32 to vector<1x128xf32>
    %20 = arith.addf %16, %19 : vector<1x128xf32>
    %21 = math.rsqrt %20 : vector<1x128xf32>
    %22 = vector.broadcast %21 : vector<1x128xf32> to vector<8x128xf32>
    %23 = arith.mulf %18, %22 : vector<8x128xf32>
    %c0_10 = arith.constant 0 : index
    %c0_11 = arith.constant 0 : index
    %24 = vector.load %arg4[%c0_10, %c0_11] : memref<1x128xf32, #tpu.memory_space<vmem>>, vector<1x128xf32>
    %25 = vector.broadcast %24 : vector<1x128xf32> to vector<8x128xf32>
    %26 = arith.mulf %23, %25 : vector<8x128xf32>
    %c0_12 = arith.constant 0 : index
    %c0_13 = arith.constant 0 : index
    %27 = vector.load %arg5[%c0_12, %c0_13] : memref<1x128xf32, #tpu.memory_space<vmem>>, vector<1x128xf32>
    %28 = vector.broadcast %27 : vector<1x128xf32> to vector<8x128xf32>
    %29 = arith.addf %26, %28 : vector<8x128xf32>
    %cst_14 = arith.constant 0.000000e+00 : f32
    %30 = vector.broadcast %cst_14 : f32 to vector<8x128xf32>
    %31 = arith.maximumf %29, %30 : vector<8x128xf32>
    %c0_15 = arith.constant 0 : index
    %c0_16 = arith.constant 0 : index
    %32 = vector.load %arg6[%c0_15, %c0_16] : memref<128x64xf32, #tpu.memory_space<vmem>>, vector<128x64xf32>
    %cst_17 = arith.constant dense<0.000000e+00> : vector<8x64xf32>
    %33 = tpu.matmul %31, %32, %cst_17 {dimension_numbers = #tpu.dot_dimension_numbers<[1], [0], [0], [1], [0, 0, 1, 1], [], []>} : vector<8x128xf32>, vector<128x64xf32>, vector<8x64xf32> -> vector<8x64xf32>
    %c0_18 = arith.constant 0 : index
    %c0_19 = arith.constant 0 : index
    %34 = vector.load %arg7[%c0_18, %c0_19] : memref<1x64xf32, #tpu.memory_space<vmem>>, vector<1x64xf32>
    %35 = vector.broadcast %34 : vector<1x64xf32> to vector<8x64xf32>
    %36 = arith.addf %33, %35 : vector<8x64xf32>
    %cst_20 = arith.constant dense<0.000000e+00> : vector<64xf32>
    %37 = vector.multi_reduction <add>, %36, %cst_20 [0] : vector<8x64xf32> to vector<64xf32>
    %38 = vector.shape_cast %37 : vector<64xf32> to vector<1x64xf32>
    %cst_21 = arith.constant 8.000000e+00 : f32
    %39 = vector.broadcast %cst_21 : f32 to vector<1x64xf32>
    %40 = arith.divf %38, %39 : vector<1x64xf32>
    %41 = vector.broadcast %40 : vector<1x64xf32> to vector<8x64xf32>
    %42 = arith.subf %36, %41 : vector<8x64xf32>
    %43 = arith.mulf %42, %42 : vector<8x64xf32>
    %cst_22 = arith.constant dense<0.000000e+00> : vector<64xf32>
    %44 = vector.multi_reduction <add>, %43, %cst_22 [0] : vector<8x64xf32> to vector<64xf32>
    %45 = vector.shape_cast %44 : vector<64xf32> to vector<1x64xf32>
    %cst_23 = arith.constant 8.000000e+00 : f32
    %46 = vector.broadcast %cst_23 : f32 to vector<1x64xf32>
    %47 = arith.divf %45, %46 : vector<1x64xf32>
    %48 = vector.broadcast %40 : vector<1x64xf32> to vector<8x64xf32>
    %49 = arith.subf %36, %48 : vector<8x64xf32>
    %cst_24 = arith.constant 9.99999974E-6 : f32
    %50 = vector.broadcast %cst_24 : f32 to vector<1x64xf32>
    %51 = arith.addf %47, %50 : vector<1x64xf32>
    %52 = math.rsqrt %51 : vector<1x64xf32>
    %53 = vector.broadcast %52 : vector<1x64xf32> to vector<8x64xf32>
    %54 = arith.mulf %49, %53 : vector<8x64xf32>
    %c0_25 = arith.constant 0 : index
    %c0_26 = arith.constant 0 : index
    %55 = vector.load %arg8[%c0_25, %c0_26] : memref<1x64xf32, #tpu.memory_space<vmem>>, vector<1x64xf32>
    %56 = vector.broadcast %55 : vector<1x64xf32> to vector<8x64xf32>
    %57 = arith.mulf %54, %56 : vector<8x64xf32>
    %c0_27 = arith.constant 0 : index
    %c0_28 = arith.constant 0 : index
    %58 = vector.load %arg9[%c0_27, %c0_28] : memref<1x64xf32, #tpu.memory_space<vmem>>, vector<1x64xf32>
    %59 = vector.broadcast %58 : vector<1x64xf32> to vector<8x64xf32>
    %60 = arith.addf %57, %59 : vector<8x64xf32>
    %cst_29 = arith.constant 0.000000e+00 : f32
    %61 = vector.broadcast %cst_29 : f32 to vector<8x64xf32>
    %62 = arith.maximumf %60, %61 : vector<8x64xf32>
    %c0_30 = arith.constant 0 : index
    %c0_31 = arith.constant 0 : index
    %63 = vector.load %arg10[%c0_30, %c0_31] : memref<1x64xf32, #tpu.memory_space<vmem>>, vector<1x64xf32>
    %64 = vector.broadcast %63 : vector<1x64xf32> to vector<8x64xf32>
    %65 = arith.mulf %62, %64 : vector<8x64xf32>
    %cst_32 = arith.constant dense<0.000000e+00> : vector<8xf32>
    %66 = vector.multi_reduction <add>, %65, %cst_32 [1] : vector<8x64xf32> to vector<8xf32>
    %67 = vector.shape_cast %66 : vector<8xf32> to vector<8x1xf32>
    %c0_33 = arith.constant 0 : index
    %c0_34 = arith.constant 0 : index
    %68 = vector.load %arg11[%c0_33, %c0_34] : memref<1x1xf32, #tpu.memory_space<vmem>>, vector<1x1xf32>
    %69 = vector.broadcast %68 : vector<1x1xf32> to vector<8x1xf32>
    %70 = arith.addf %67, %69 : vector<8x1xf32>
    %71 = math.absf %70 : vector<8x1xf32>
    %cst_35 = arith.constant 0.000000e+00 : f32
    %72 = vector.broadcast %cst_35 : f32 to vector<8x1xf32>
    %73 = arith.subf %72, %71 : vector<8x1xf32>
    %74 = math.exp %73 : vector<8x1xf32>
    %cst_36 = arith.constant 0.000000e+00 : f32
    %75 = vector.broadcast %cst_36 : f32 to vector<8x1xf32>
    %76 = arith.cmpf oge, %70, %75 : vector<8x1xf32>
    %cst_37 = arith.constant 1.000000e+00 : f32
    %77 = vector.broadcast %cst_37 : f32 to vector<8x1xf32>
    %78 = arith.addf %77, %74 : vector<8x1xf32>
    %cst_38 = arith.constant 1.000000e+00 : f32
    %79 = vector.broadcast %cst_38 : f32 to vector<8x1xf32>
    %80 = arith.divf %79, %78 : vector<8x1xf32>
    %cst_39 = arith.constant 1.000000e+00 : f32
    %81 = vector.broadcast %cst_39 : f32 to vector<8x1xf32>
    %82 = arith.addf %81, %74 : vector<8x1xf32>
    %83 = arith.divf %74, %82 : vector<8x1xf32>
    %84 = arith.select %76, %80, %83 : vector<8x1xi1>, vector<8x1xf32>
    %c0_40 = arith.constant 0 : index
    %c0_41 = arith.constant 0 : index
    %85 = vector.load %arg12[%c0_40, %c0_41] : memref<8x1xf32, #tpu.memory_space<vmem>>, vector<8x1xf32>
    tpu.vector_store %arg12[%c0_40, %c0_41], %84 {strides = array<i32>} : memref<8x1xf32, #tpu.memory_space<vmem>>, vector<8x1xf32>,
    return
  }
  func.func @transform_0(%arg0: i32) -> (i32, i32) {
    %c0_i32 = arith.constant 0 : i32
    %c0_i32_0 = arith.constant 0 : i32
    %c0_i32_1 = arith.constant 0 : i32
    return %c0_i32, %c0_i32_0 : i32, i32
  }
  func.func @transform_1(%arg0: i32) -> (i32, i32) {
    %c0_i32 = arith.constant 0 : i32
    %c0_i32_0 = arith.constant 0 : i32
    %c0_i32_1 = arith.constant 0 : i32
    return %c0_i32, %c0_i32_0 : i32, i32
  }
  func.func @transform_2(%arg0: i32) -> (i32, i32) {
    %c0_i32 = arith.constant 0 : i32
    %c0_i32_0 = arith.constant 0 : i32
    %c0_i32_1 = arith.constant 0 : i32
    return %c0_i32, %c0_i32_0 : i32, i32
  }
  func.func @transform_3(%arg0: i32) -> (i32, i32) {
    %c0_i32 = arith.constant 0 : i32
    %c0_i32_0 = arith.constant 0 : i32
    %c0_i32_1 = arith.constant 0 : i32
    return %c0_i32, %c0_i32_0 : i32, i32
  }
  func.func @transform_4(%arg0: i32) -> (i32, i32) {
    %c0_i32 = arith.constant 0 : i32
    %c0_i32_0 = arith.constant 0 : i32
    %c0_i32_1 = arith.constant 0 : i32
    return %c0_i32, %c0_i32_0 : i32, i32
  }
  func.func @transform_5(%arg0: i32) -> (i32, i32) {
    %c0_i32 = arith.constant 0 : i32
    %c0_i32_0 = arith.constant 0 : i32
    %c0_i32_1 = arith.constant 0 : i32
    return %c0_i32, %c0_i32_0 : i32, i32
  }
  func.func @transform_6(%arg0: i32) -> (i32, i32) {
    %c0_i32 = arith.constant 0 : i32
    %c0_i32_0 = arith.constant 0 : i32
    %c0_i32_1 = arith.constant 0 : i32
    return %c0_i32, %c0_i32_0 : i32, i32
  }
  func.func @transform_7(%arg0: i32) -> (i32, i32) {
    %c0_i32 = arith.constant 0 : i32
    %c0_i32_0 = arith.constant 0 : i32
    %c0_i32_1 = arith.constant 0 : i32
    return %c0_i32, %c0_i32_0 : i32, i32
  }
  func.func @transform_8(%arg0: i32) -> (i32, i32) {
    %c0_i32 = arith.constant 0 : i32
    %c0_i32_0 = arith.constant 0 : i32
    %c0_i32_1 = arith.constant 0 : i32
    return %c0_i32, %c0_i32_0 : i32, i32
  }
  func.func @transform_9(%arg0: i32) -> (i32, i32) {
    %c0_i32 = arith.constant 0 : i32
    %c0_i32_0 = arith.constant 0 : i32
    %c0_i32_1 = arith.constant 0 : i32
    return %c0_i32, %c0_i32_0 : i32, i32
  }
  func.func @transform_10(%arg0: i32) -> (i32, i32) {
    %c0_i32 = arith.constant 0 : i32
    %c0_i32_0 = arith.constant 0 : i32
    %c0_i32_1 = arith.constant 0 : i32
    return %c0_i32, %c0_i32_0 : i32, i32
  }
  func.func @transform_11(%arg0: i32) -> (i32, i32) {
    %c0_i32 = arith.constant 0 : i32
    %c0_i32_0 = arith.constant 0 : i32
    %c0_i32_1 = arith.constant 0 : i32
    return %c0_i32, %c0_i32_0 : i32, i32
  }
}

</mosaic_0001>

<llo_original>
// kernel: fc_spatial_discriminator_forward.1
$region0: #{fc_spatial_discriminator_forward.1}
  #allocation0 [shape = 'u32[]', space=smem, size = 0x4, offset = 0x4, fixed_abs, tag = 'smem constant byte address 0x4 - core index']
  #allocation1 [shape = 'u32[144,128]{1,0:T(1,128)}', space=vmem, size = 0x12000, scoped, tag = 'internal scratch']
  #allocation2 [shape = 'f32[1,1]{1,0:T(1,128)S(1)}', space=vmem, size = 0x200, scoped, tag = 'scoped memory for fc_spatial_discriminator_forward.1']
  %s0 = inlined_call_operand.vmem [shape: f32[8,32], index: 0, kind: input, shape index: {}]
  %s1 = inlined_call_operand.vmem [shape: f32[32,128], index: 1, kind: input, shape index: {}]
  %s2 = inlined_call_operand.vmem [shape: f32[1,128], index: 2, kind: input, shape index: {}]
  %s3 = inlined_call_operand.vmem [shape: f32[1,128], index: 3, kind: input, shape index: {}]
  %s4 = inlined_call_operand.vmem [shape: f32[1,128], index: 4, kind: input, shape index: {}]
  %s5 = inlined_call_operand.vmem [shape: f32[128,64], index: 5, kind: input, shape index: {}]
  %s6 = inlined_call_operand.vmem [shape: f32[1,64], index: 6, kind: input, shape index: {}]
  %s7 = inlined_call_operand.vmem [shape: f32[1,64], index: 7, kind: input, shape index: {}]
  %s8 = inlined_call_operand.vmem [shape: f32[1,64], index: 8, kind: input, shape index: {}]
  %s9 = inlined_call_operand.vmem [shape: f32[1,64], index: 9, kind: input, shape index: {}]
  %s10 = inlined_call_operand.<no memory space> [shape: f32[1,1], index: 10, kind: input, shape index: {}]
  %s11 = inlined_call_operand.vmem [shape: f32[8,1], index: 11, kind: output, shape index: {}]
  %s12 = sld [smem:[#allocation0]]
  $region54: #{fc_spatial_discriminator_forward.1} parent=0
    _
  %s14 = ssub.s32 1, %s12
  %s15 = scalar_select 0, %s14, %s12
  %v16 = vstv %s10
  %17 = vst [vmem:[#allocation2] sm:$0x1] %v16
  // Predicated region
  $region2: #{fc_spatial_discriminator_forward.1} parent=0 // pred_check
    _
  $region3: #{fc_spatial_discriminator_forward.1} parent=0 // pred_check_branch
    %19 = sbr.rel (0) target = $region5
  $region4: #{fc_spatial_discriminator_forward.1} parent=0 // pred_region
    _
  $region5: #{fc_spatial_discriminator_forward.1} parent=0 // pred_fallthru
    _
  // Predicated region
  $region6: #{fc_spatial_discriminator_forward.1} parent=0 // pred_check
    _
  $region7: #{fc_spatial_discriminator_forward.1} parent=0 // pred_check_branch
    %21 = sbr.rel (0) target = $region9
  $region8: #{fc_spatial_discriminator_forward.1} parent=0 // pred_region
    _
  $region9: #{fc_spatial_discriminator_forward.1} parent=0 // pred_fallthru
    _
  // Predicated region
  $region10: #{fc_spatial_discriminator_forward.1} parent=0 // pred_check
    _
  $region11: #{fc_spatial_discriminator_forward.1} parent=0 // pred_check_branch
    %23 = sbr.rel (0) target = $region13
  $region12: #{fc_spatial_discriminator_forward.1} parent=0 // pred_region
    _
  $region13: #{fc_spatial_discriminator_forward.1} parent=0 // pred_fallthru
    _
  // Predicated region
  $region14: #{fc_spatial_discriminator_forward.1} parent=0 // pred_check
    _
  $region15: #{fc_spatial_discriminator_forward.1} parent=0 // pred_check_branch
    %25 = sbr.rel (0) target = $region17
  $region16: #{fc_spatial_discriminator_forward.1} parent=0 // pred_region
    _
  $region17: #{fc_spatial_discriminator_forward.1} parent=0 // pred_fallthru
    _
  // Predicated region
  $region18: #{fc_spatial_discriminator_forward.1} parent=0 // pred_check
    _
  $region19: #{fc_spatial_discriminator_forward.1} parent=0 // pred_check_branch
    %27 = sbr.rel (0) target = $region21
  $region20: #{fc_spatial_discriminator_forward.1} parent=0 // pred_region
    _
  $region21: #{fc_spatial_discriminator_forward.1} parent=0 // pred_fallthru
    _
  // Predicated region
  $region22: #{fc_spatial_discriminator_forward.1} parent=0 // pred_check
    _
  $region23: #{fc_spatial_discriminator_forward.1} parent=0 // pred_check_branch
    %29 = sbr.rel (0) target = $region25
  $region24: #{fc_spatial_discriminator_forward.1} parent=0 // pred_region
    _
  $region25: #{fc_spatial_discriminator_forward.1} parent=0 // pred_fallthru
    _
  // Predicated region
  $region26: #{fc_spatial_discriminator_forward.1} parent=0 // pred_check
    _
  $region27: #{fc_spatial_discriminator_forward.1} parent=0 // pred_check_branch
    %31 = sbr.rel (0) target = $region29
  $region28: #{fc_spatial_discriminator_forward.1} parent=0 // pred_region
    _
  $region29: #{fc_spatial_discriminator_forward.1} parent=0 // pred_fallthru
    _
  // Predicated region
  $region30: #{fc_spatial_discriminator_forward.1} parent=0 // pred_check
    _
  $region31: #{fc_spatial_discriminator_forward.1} parent=0 // pred_check_branch
    %33 = sbr.rel (0) target = $region33
  $region32: #{fc_spatial_discriminator_forward.1} parent=0 // pred_region
    _
  $region33: #{fc_spatial_discriminator_forward.1} parent=0 // pred_fallthru
    _
  // Predicated region
  $region34: #{fc_spatial_discriminator_forward.1} parent=0 // pred_check
    _
  $region35: #{fc_spatial_discriminator_forward.1} parent=0 // pred_check_branch
    %35 = sbr.rel (0) target = $region37
  $region36: #{fc_spatial_discriminator_forward.1} parent=0 // pred_region
    _
  $region37: #{fc_spatial_discriminator_forward.1} parent=0 // pred_fallthru
    _
  // Predicated region
  $region38: #{fc_spatial_discriminator_forward.1} parent=0 // pred_check
    _
  $region39: #{fc_spatial_discriminator_forward.1} parent=0 // pred_check_branch
    %37 = sbr.rel (0) target = $region41
  $region40: #{fc_spatial_discriminator_forward.1} parent=0 // pred_region
    _
  $region41: #{fc_spatial_discriminator_forward.1} parent=0 // pred_fallthru
    _
  // Predicated region
  $region42: #{fc_spatial_discriminator_forward.1} parent=0 // pred_check
    _
  $region43: #{fc_spatial_discriminator_forward.1} parent=0 // pred_check_branch
    %39 = sbr.rel (0) target = $region45
  $region44: #{fc_spatial_discriminator_forward.1} parent=0 // pred_region
    _
  $region45: #{fc_spatial_discriminator_forward.1} parent=0 // pred_fallthru
    _
  %v40 = vld [vmem:[%s0] sm:$0xff]
  %v41 = vld [vmem:[%s1] sm:$0xff]
  %v42 = vld [vmem:[%s1 + $0x8] sm:$0xff]
  %v43 = vld [vmem:[%s1 + $0x10] sm:$0xff]
  %v44 = vld [vmem:[%s1 + $0x18] sm:$0xff]
  %v45 = vld [vmem:[%s2] sm:$0x1]
  %v47 = vlaneseq
  %v48 = vshrl.u32 %v47, 7
  %v49 = vsub.s32 0, %v48
  %v50 = vrot.slane %v45, %v49
  %vm52 = vcmask 261120
  %v54 = vsel %vm52, %v40, 0
  %56 = vmatprep.subr.mxu0 0.0
  %57 = vmatpush1.msra.mxu0 %v41
  %58 = vmatprep.subr.mxu0 0.0
  %59 = vmatpush1.msra.mxu0 %v42
  %60 = vmatprep.subr.mxu0 0.0
  %61 = vmatpush1.msra.mxu0 %v43
  %62 = vmatprep.subr.mxu0 0.0
  %63 = vmatpush1.msra.mxu0 %v44
  %64 = vmatprep.subr.mxu0 0.0
  %65 = vmatpush1.msra.mxu0 0.0
  %66 = vmatprep.subr.mxu0 0.0
  %67 = vmatpush1.msra.mxu0 0.0
  %68 = vmatprep.subr.mxu0 0.0
  %69 = vmatpush1.msra.mxu0 0.0
  %70 = vmatprep.subr.mxu0 0.0
  %71 = vmatpush1.msra.mxu0 0.0
  %72 = vmatprep.subr.mxu0 0.0
  %73 = vmatpush1.msra.mxu0 0.0
  %74 = vmatprep.subr.mxu0 0.0
  %75 = vmatpush1.msra.mxu0 0.0
  %76 = vmatprep.subr.mxu0 0.0
  %77 = vmatpush1.msra.mxu0 0.0
  %78 = vmatprep.subr.mxu0 0.0
  %79 = vmatpush1.msra.mxu0 0.0
  %80 = vmatprep.subr.mxu0 0.0
  %81 = vmatpush1.msra.mxu0 0.0
  %82 = vmatprep.subr.mxu0 0.0
  %83 = vmatpush1.msra.mxu0 0.0
  %84 = vmatprep.subr.mxu0 0.0
  %85 = vmatpush1.msra.mxu0 0.0
  %86 = vmatprep.subr.mxu0 0.0
  %87 = vmatpush1.msra.mxu0 0.0
  %88 = vmatprep.subr.mxu0 0.0
  %89 = vmatpush1.msra.mxu0 0.0
  %90 = vmatprep.subr.mxu0 0.0
  %91 = vmatpush1.msra.mxu0 0.0
  %92 = vmatprep.subr.mxu0 0.0
  %93 = vmatpush1.msra.mxu0 0.0
  %94 = vmatprep.subr.mxu0 0.0
  %95 = vmatpush1.msra.mxu0 0.0
  %96 = vmatprep.subr.mxu0 0.0
  %97 = vmatpush1.msra.mxu0 0.0
  %98 = vmatprep.subr.mxu0 0.0
  %99 = vmatpush1.msra.mxu0 0.0
  %100 = vmatprep.subr.mxu0 0.0
  %101 = vmatpush1.msra.mxu0 0.0
  %102 = vmatprep.subr.mxu0 0.0
  %103 = vmatpush1.msra.mxu0 0.0
  %104 = vmatprep.subr.mxu0 0.0
  %105 = vmatpush1.msra.mxu0 0.0
  %106 = vmatprep.subr.mxu0 0.0
  %107 = vmatpush1.msra.mxu0 0.0
  %108 = vmatprep.subr.mxu0 0.0
  %109 = vmatpush1.msra.mxu0 0.0
  %110 = vmatprep.subr.mxu0 0.0
  %111 = vmatpush1.msra.mxu0 0.0
  %112 = vmatprep.subr.mxu0 0.0
  %113 = vmatpush1.msra.mxu0 0.0
  %114 = vmatprep.subr.mxu0 0.0
  %115 = vmatpush1.msra.mxu0 0.0
  %116 = vmatprep.subr.mxu0 0.0
  %117 = vmatpush1.msra.mxu0 0.0
  %118 = vmatprep.subr.mxu0 0.0
  %119 = vmatpush1.msra.mxu0 0.0
  %120 = vmatprep.mubr.f32.mxu0 0.0
  %121 = vmatmul.mubr.f32.gmra.mrb[0].mxu0 %v54
  %v122 = vpop.f32.mrb[0].mxu0
  %v123 = vadd.f32 %v50, %v122
  %v124 = vpop.f32.mrb[0].mxu0
  %125 = vdwg.mxu0
  %v126 = vrot.slane %v123, 4
  %v127 = vadd.f32 %v123, %v126
  %v128 = vrot.slane %v127, 2
  %v129 = vadd.f32 %v127, %v128
  %v130 = vrot.slane %v129, 1
  %v131 = vadd.f32 %v129, %v130
  %v132 = vrcp.pop 8.0
  %v133 = vmul.f32 %v131, %v132
  %v134 = vsub.f32 %v123, %v133
  %v135 = vmul.f32 %v134, %v134
  %v136 = vrot.slane %v135, 4
  %v137 = vadd.f32 %v135, %v136
  %v138 = vrot.slane %v137, 2
  %v139 = vadd.f32 %v137, %v138
  %v140 = vrot.slane %v139, 1
  %v141 = vadd.f32 %v139, %v140
  %v142 = vmul.f32 %v141, %v132
  %v143 = vadd.f32 %v142, 1e-05
  %v144 = vrsqrt.pop %v143
  %v145 = vmul.f32 %v134, %v144
  %v146 = vld [vmem:[%s3] sm:$0x1]
  %v148 = vlaneseq
  %v149 = vshrl.u32 %v148, 7
  %v150 = vsub.s32 0, %v149
  %v151 = vrot.slane %v146, %v150
  %v153 = vmul.f32 %v145, %v151
  %v154 = vld [vmem:[%s4] sm:$0x1]
  %v156 = vlaneseq
  %v157 = vshrl.u32 %v156, 7
  %v158 = vsub.s32 0, %v157
  %v159 = vrot.slane %v154, %v158
  %v161 = vadd.f32 %v153, %v159
  %v162 = vmax.f32 %v161, 0.0
  %v163 = vld [vmem:[%s5] sm:$0xff]
  %v164 = vld [vmem:[%s5 + $0x8] sm:$0xff]
  %v165 = vld [vmem:[%s5 + $0x10] sm:$0xff]
  %v166 = vld [vmem:[%s5 + $0x18] sm:$0xff]
  %v167 = vld [vmem:[%s5 + $0x20] sm:$0xff]
  %v168 = vld [vmem:[%s5 + $0x28] sm:$0xff]
  %v169 = vld [vmem:[%s5 + $0x30] sm:$0xff]
  %v170 = vld [vmem:[%s5 + $0x38] sm:$0xff]
  %v171 = vld [vmem:[%s5 + $0x40] sm:$0xff]
  %v172 = vld [vmem:[%s5 + $0x48] sm:$0xff]
  %v173 = vld [vmem:[%s5 + $0x50] sm:$0xff]
  %v174 = vld [vmem:[%s5 + $0x58] sm:$0xff]
  %v175 = vld [vmem:[%s5 + $0x60] sm:$0xff]
  %v176 = vld [vmem:[%s5 + $0x68] sm:$0xff]
  %v177 = vld [vmem:[%s5 + $0x70] sm:$0xff]
  %v178 = vld [vmem:[%s5 + $0x78] sm:$0xff]
  %v179 = vld [vmem:[%s6] sm:$0x1]
  %v181 = vlaneseq
  %v182 = vshrl.u32 %v181, 7
  %v183 = vsub.s32 0, %v182
  %v184 = vrot.slane %v179, %v183
  %186 = vmatprep.subr.mxu0 0.0
  %187 = vmatpush1.msra.mxu0 %v163
  %188 = vmatprep.subr.mxu0 0.0
  %189 = vmatpush1.msra.mxu0 %v164
  %190 = vmatprep.subr.mxu0 0.0
  %191 = vmatpush1.msra.mxu0 %v165
  %192 = vmatprep.subr.mxu0 0.0
  %193 = vmatpush1.msra.mxu0 %v166
  %194 = vmatprep.subr.mxu0 0.0
  %195 = vmatpush1.msra.mxu0 %v167
  %196 = vmatprep.subr.mxu0 0.0
  %197 = vmatpush1.msra.mxu0 %v168
  %198 = vmatprep.subr.mxu0 0.0
  %199 = vmatpush1.msra.mxu0 %v169
  %200 = vmatprep.subr.mxu0 0.0
  %201 = vmatpush1.msra.mxu0 %v170
  %202 = vmatprep.subr.mxu0 0.0
  %203 = vmatpush1.msra.mxu0 %v171
  %204 = vmatprep.subr.mxu0 0.0
  %205 = vmatpush1.msra.mxu0 %v172
  %206 = vmatprep.subr.mxu0 0.0
  %207 = vmatpush1.msra.mxu0 %v173
  %208 = vmatprep.subr.mxu0 0.0
  %209 = vmatpush1.msra.mxu0 %v174
  %210 = vmatprep.subr.mxu0 0.0
  %211 = vmatpush1.msra.mxu0 %v175
  %212 = vmatprep.subr.mxu0 0.0
  %213 = vmatpush1.msra.mxu0 %v176
  %214 = vmatprep.subr.mxu0 0.0
  %215 = vmatpush1.msra.mxu0 %v177
  %216 = vmatprep.subr.mxu0 0.0
  %217 = vmatpush1.msra.mxu0 %v178
  %218 = vmatprep.subr.mxu0 0.0
  %219 = vmatpush1.msra.mxu0 0.0
  %220 = vmatprep.subr.mxu0 0.0
  %221 = vmatpush1.msra.mxu0 0.0
  %222 = vmatprep.subr.mxu0 0.0
  %223 = vmatpush1.msra.mxu0 0.0
  %224 = vmatprep.subr.mxu0 0.0
  %225 = vmatpush1.msra.mxu0 0.0
  %226 = vmatprep.subr.mxu0 0.0
  %227 = vmatpush1.msra.mxu0 0.0
  %228 = vmatprep.subr.mxu0 0.0
  %229 = vmatpush1.msra.mxu0 0.0
  %230 = vmatprep.subr.mxu0 0.0
  %231 = vmatpush1.msra.mxu0 0.0
  %232 = vmatprep.subr.mxu0 0.0
  %233 = vmatpush1.msra.mxu0 0.0
  %234 = vmatprep.subr.mxu0 0.0
  %235 = vmatpush1.msra.mxu0 0.0
  %236 = vmatprep.subr.mxu0 0.0
  %237 = vmatpush1.msra.mxu0 0.0
  %238 = vmatprep.subr.mxu0 0.0
  %239 = vmatpush1.msra.mxu0 0.0
  %240 = vmatprep.subr.mxu0 0.0
  %241 = vmatpush1.msra.mxu0 0.0
  %242 = vmatprep.subr.mxu0 0.0
  %243 = vmatpush1.msra.mxu0 0.0
  %244 = vmatprep.subr.mxu0 0.0
  %245 = vmatpush1.msra.mxu0 0.0
  %246 = vmatprep.subr.mxu0 0.0
  %247 = vmatpush1.msra.mxu0 0.0
  %248 = vmatprep.subr.mxu0 0.0
  %249 = vmatpush1.msra.mxu0 0.0
  %250 = vmatprep.mubr.f32.mxu0 0.0
  %251 = vmatmul.mubr.f32.gmra.mrb[0].mxu0 %v162
  %v252 = vpop.f32.mrb[0].mxu0
  %v253 = vadd.f32 %v184, %v252
  %v254 = vpop.f32.mrb[0].mxu0
  %255 = vdwg.mxu0
  %vm256 = vcmask 523264
  %v257 = vsel %vm256, %v253, 0.0
  %v258 = vrot.slane %v257, 4
  %v259 = vadd.f32 %v257, %v258
  %v260 = vrot.slane %v259, 2
  %v261 = vadd.f32 %v259, %v260
  %v262 = vrot.slane %v261, 1
  %v263 = vadd.f32 %v261, %v262
  %v264 = vmul.f32 %v263, %v132
  %v265 = vsub.f32 %v253, %v264
  %v266 = vmul.f32 %v265, %v265
  %v267 = vsel %vm256, %v266, 0.0
  %v268 = vrot.slane %v267, 4
  %v269 = vadd.f32 %v267, %v268
  %v270 = vrot.slane %v269, 2
  %v271 = vadd.f32 %v269, %v270
  %v272 = vrot.slane %v271, 1
  %v273 = vadd.f32 %v271, %v272
  %v274 = vmul.f32 %v273, %v132
  %v275 = vadd.f32 %v274, 1e-05
  %v276 = vrsqrt.pop %v275
  %v277 = vmul.f32 %v265, %v276
  %v278 = vld [vmem:[%s7] sm:$0x1]
  %v280 = vlaneseq
  %v281 = vshrl.u32 %v280, 7
  %v282 = vsub.s32 0, %v281
  %v283 = vrot.slane %v278, %v282
  %v285 = vmul.f32 %v277, %v283
  %v286 = vld [vmem:[%s8] sm:$0x1]
  %v288 = vlaneseq
  %v289 = vshrl.u32 %v288, 7
  %v290 = vsub.s32 0, %v289
  %v291 = vrot.slane %v286, %v290
  %v293 = vadd.f32 %v285, %v291
  %v294 = vmax.f32 %v293, 0.0
  %v295 = vld [vmem:[%s9] sm:$0x1]
  %v297 = vlaneseq
  %v298 = vshrl.u32 %v297, 7
  %v299 = vsub.s32 0, %v298
  %v300 = vrot.slane %v295, %v299
  %v302 = vmul.f32 %v294, %v300
  %v303 = vsel %vm256, %v302, 0.0
  %304 = vadd.xlane.f32.xlu0 %v303
  %v305 = vpop.xlane.xlu0 %304
  %v306 = vld [vmem:[#allocation2] sm:$0x1]
  %v308 = vlaneseq
  %v309 = vshrl.u32 %v308, 7
  %v310 = vsub.s32 0, %v309
  %v311 = vrot.slane %v306, %v310
  %v313 = vadd.f32 %v305, %v311
  %v314 = vand.u32 2147483647, %v313
  %v315 = vsub.f32 0.0, %v314
  %v316 = vmul.f32 %v315, 1.442695
  %v317 = vpow.pop %v316
  %vm318 = vcmp.ge.f32.partialorder %v313, 0.0
  %v319 = vadd.f32 %v317, 1.0
  %v320 = vrcp.pop %v319
  %v321 = vmul.f32 1.0, %v320
  %v322 = vmul.f32 %v317, %v320
  %v323 = vsel %vm318, %v321, %v322
  %vm324 = vcmask 7168
  %325 = vst.msk [vmem:[%s11] sm:$0xff] %vm324, %v323
  // Predicated region
  $region46: #{fc_spatial_discriminator_forward.1} parent=0 // pred_check
    _
  $region47: #{fc_spatial_discriminator_forward.1} parent=0 // pred_check_branch
    %327 = sbr.rel (0) target = $region49
  $region48: #{fc_spatial_discriminator_forward.1} parent=0 // pred_region
    _
  $region49: #{fc_spatial_discriminator_forward.1} parent=0 // pred_fallthru
    _
  // Predicated region
  $region50: #{fc_spatial_discriminator_forward.1} parent=0 // pred_check
    _
  $region51: #{fc_spatial_discriminator_forward.1} parent=0 // pred_check_branch
    %329 = sbr.rel (0) target = $region53
  $region52: #{fc_spatial_discriminator_forward.1} parent=0 // pred_region
    _
  $region53: #{fc_spatial_discriminator_forward.1} parent=0 // pred_fallthru
    _

</llo_original>
